<compile_context>
chip_gen: v7x
topology: tpu7x:2x2x1
jax: 0.10.0
libtpu: 0.0.40
codegen_flags: <defaults>
</compile_context>

<pallas_src>
import functools

import jax
import jax.numpy as jnp
from jax.experimental import pallas as pl
from jax.experimental.pallas import tpu as pltpu

_MARGIN = 0.2
_EPS = 1e-6  # PyTorch F.pairwise_distance default eps (added to the difference)


def _to_f32(x):
    # Upcast only when needed (bf16 inputs); f32 inputs pass through untouched.
    return x if x.dtype == jnp.float32 else x.astype(jnp.float32)


def _choose_tb(B, D, dtype):
    """Pick a row-tile size: big enough to hit the HBM roofline, small enough for VMEM."""
    itemsize = jnp.dtype(dtype).itemsize
    align = 16 if jnp.dtype(dtype) == jnp.bfloat16 else 8  # bf16 packs 16 sublanes
    budget = 8 * 1024 * 1024  # bytes for 3 inputs x 2 pipeline buffers (fits v5e too)
    per_row = 3 * 2 * D * itemsize
    max_rows = max(budget // per_row, align)
    tb = min(4096, B, max_rows)
    if tb >= align:
        tb -= tb % align
    else:
        tb = B  # tiny batch: single block spanning the full sublane extent
    return max(tb, 1)


def _make_kernel(B, TB, margin, eps, needs_mask):
    def kernel(a_ref, p_ref, n_ref, o_ref):
        a = _to_f32(a_ref[...])
        p = _to_f32(p_ref[...])
        n = _to_f32(n_ref[...])

        # F.pairwise_distance(x1, x2, 2): ||x1 - x2 + eps||_2 along last dim
        dp = a - p + eps
        dn = a - n + eps
        d_pos = jnp.sqrt(jnp.sum(dp * dp, axis=-1, keepdims=True))  # (TB, 1)
        d_neg = jnp.sqrt(jnp.sum(dn * dn, axis=-1, keepdims=True))  # (TB, 1)

        per_row = jnp.maximum(d_pos - d_neg + margin, 0.0)  # (TB, 1)

        if needs_mask:
            # Zero out padded rows of the tail tile so they don't contribute `margin`
            # (or garbage from the undefined out-of-bounds block data).
            row0 = pl.program_id(0) * TB
            rows = row0 + jax.lax.broadcasted_iota(jnp.int32, (TB, 1), 0)
            per_row = jnp.where(rows < B, per_row, 0.0)

        tile_sum = jnp.sum(per_row)
        # Lane/sublane-conforming (1, 8, 128) output block; wrapper reads [i, 0, 0].
        o_ref[...] = jnp.full(o_ref.shape, tile_sum, dtype=jnp.float32)

    return kernel


@functools.partial(jax.jit, static_argnames=("margin", "eps", "tb"))
def triplet_loss(anchor, positive, negative, *, margin=_MARGIN, eps=_EPS, tb=None):
    B, D = anchor.shape
    if tb is None:
        tb = _choose_tb(B, D, anchor.dtype)
    tb = min(tb, B)
    num_tiles = pl.cdiv(B, tb)
    needs_mask = (B % tb) != 0

    kernel = _make_kernel(B, tb, float(margin), float(eps), needs_mask)
    itemsize = jnp.dtype(anchor.dtype).itemsize

    partials = pl.pallas_call(
        kernel,
        out_shape=jax.ShapeDtypeStruct((num_tiles, 8, 128), jnp.float32),
        grid_spec=pltpu.PrefetchScalarGridSpec(
            num_scalar_prefetch=0,
            grid=(num_tiles,),
            in_specs=[
                pl.BlockSpec((tb, D), lambda i: (i, 0)),
                pl.BlockSpec((tb, D), lambda i: (i, 0)),
                pl.BlockSpec((tb, D), lambda i: (i, 0)),
            ],
            out_specs=pl.BlockSpec((1, 8, 128), lambda i: (i, 0, 0)),
        ),
        compiler_params=pltpu.CompilerParams(
            dimension_semantics=("parallel",),
        ),
        cost_estimate=pl.CostEstimate(
            flops=8 * B * D,
            transcendentals=2 * B,
            bytes_accessed=3 * B * D * itemsize,
        ),
    )(anchor, positive, negative)

    # Per-tile partial sums live at [i, 0, 0]; final mean over the true batch size.
    return jnp.sum(partials[:, 0, 0]) / B


if __name__ == "__main__":
    key = jax.random.PRNGKey(0)
    k_a, k_p, k_n = jax.random.split(key, 3)
    B, D = 40, 128  # small shapes; B % tb != 0 exercises the tail-masking path
    anchor = jax.random.normal(k_a, (B, D), dtype=jnp.float32)
    positive = jax.random.normal(k_p, (B, D), dtype=jnp.float32)
    negative = jax.random.normal(k_n, (B, D), dtype=jnp.float32)

    # Force several batch tiles (tb=16 -> 3 tiles, last one padded) to exercise
    # the pipelined / parallel partial-sum path even at small demo shapes.
    loss = triplet_loss(anchor, positive, negative, tb=16)
    jax.block_until_ready(loss)

    # Default (auto tile-size) path as well: single tile, no masking.
    loss_auto = triplet_loss(anchor, positive, negative)
    jax.block_until_ready(loss_auto)

    # Pure-JAX reference (same math as the PyTorch module).
    d_pos = jnp.sqrt(jnp.sum((anchor - positive + _EPS) ** 2, axis=-1))
    d_neg = jnp.sqrt(jnp.sum((anchor - negative + _EPS) ** 2, axis=-1))
    ref = jnp.mean(jnp.maximum(d_pos - d_neg + _MARGIN, 0.0))
    assert jnp.allclose(loss, ref, atol=1e-5, rtol=1e-5), (loss, ref)
    assert jnp.allclose(loss_auto, ref, atol=1e-5, rtol=1e-5), (loss_auto, ref)

    print("KERNEL_OK")
</pallas_src>

<mosaic_0001>
module attributes {stable_mosaic.version = 11 : i64} {
  func.func @kernel(%arg0: i32, %arg1: memref<16x128xf32, #tpu.memory_space<vmem>>, %arg2: memref<16x128xf32, #tpu.memory_space<vmem>>, %arg3: memref<16x128xf32, #tpu.memory_space<vmem>>, %arg4: memref<1x8x128xf32, #tpu.memory_space<vmem>>) attributes {dimension_semantics = [#tpu.dimension_semantics<parallel>], iteration_bounds = array<i64: 3>, scalar_prefetch = 0 : i64, scratch_operands = 0 : i64, tpu.core_type = #tpu.core_type<tc>, window_params = [{transform_indices = @transform_0, window_bounds = array<i64: 16, 128>}, {transform_indices = @transform_1, window_bounds = array<i64: 16, 128>}, {transform_indices = @transform_2, window_bounds = array<i64: 16, 128>}, {transform_indices = @transform_3, window_bounds = array<i64: 1, 8, 128>}]} {
    %c0 = arith.constant 0 : index
    %c0_0 = arith.constant 0 : index
    %0 = vector.load %arg1[%c0, %c0_0] : memref<16x128xf32, #tpu.memory_space<vmem>>, vector<16x128xf32>
    %c0_1 = arith.constant 0 : index
    %c0_2 = arith.constant 0 : index
    %1 = vector.load %arg2[%c0_1, %c0_2] : memref<16x128xf32, #tpu.memory_space<vmem>>, vector<16x128xf32>
    %c0_3 = arith.constant 0 : index
    %c0_4 = arith.constant 0 : index
    %2 = vector.load %arg3[%c0_3, %c0_4] : memref<16x128xf32, #tpu.memory_space<vmem>>, vector<16x128xf32>
    %3 = arith.subf %0, %1 : vector<16x128xf32>
    %cst = arith.constant 9.99999997E-7 : f32
    %4 = vector.broadcast %cst : f32 to vector<16x128xf32>
    %5 = arith.addf %3, %4 : vector<16x128xf32>
    %6 = arith.subf %0, %2 : vector<16x128xf32>
    %cst_5 = arith.constant 9.99999997E-7 : f32
    %7 = vector.broadcast %cst_5 : f32 to vector<16x128xf32>
    %8 = arith.addf %6, %7 : vector<16x128xf32>
    %9 = arith.mulf %5, %5 : vector<16x128xf32>
    %cst_6 = arith.constant dense<0.000000e+00> : vector<16xf32>
    %10 = vector.multi_reduction <add>, %9, %cst_6 [1] : vector<16x128xf32> to vector<16xf32>
    %11 = vector.shape_cast %10 : vector<16xf32> to vector<16x1xf32>
    %12 = math.sqrt %11 : vector<16x1xf32>
    %13 = arith.mulf %8, %8 : vector<16x128xf32>
    %cst_7 = arith.constant dense<0.000000e+00> : vector<16xf32>
    %14 = vector.multi_reduction <add>, %13, %cst_7 [1] : vector<16x128xf32> to vector<16xf32>
    %15 = vector.shape_cast %14 : vector<16xf32> to vector<16x1xf32>
    %16 = math.sqrt %15 : vector<16x1xf32>
    %17 = arith.subf %12, %16 : vector<16x1xf32>
    %cst_8 = arith.constant 2.000000e-01 : f32
    %18 = vector.broadcast %cst_8 : f32 to vector<16x1xf32>
    %19 = arith.addf %17, %18 : vector<16x1xf32>
    %cst_9 = arith.constant 0.000000e+00 : f32
    %20 = vector.broadcast %cst_9 : f32 to vector<16x1xf32>
    %21 = arith.maximumf %19, %20 : vector<16x1xf32>
    %c16_i32 = arith.constant 16 : i32
    %22 = arith.muli %arg0, %c16_i32 : i32
    %23 = tpu.iota {dimensions = array<i32: 0>} : vector<16x1xi32>
    %24 = vector.broadcast %22 : i32 to vector<16x1xi32>
    %25 = arith.addi %24, %23 : vector<16x1xi32>
    %c40_i32 = arith.constant 40 : i32
    %26 = vector.broadcast %c40_i32 : i32 to vector<16x1xi32>
    %27 = arith.cmpi slt, %25, %26 : vector<16x1xi32>
    %cst_10 = arith.constant 0.000000e+00 : f32
    %28 = vector.broadcast %cst_10 : f32 to vector<16x1xf32>
    %29 = arith.select %27, %21, %28 : vector<16x1xi1>, vector<16x1xf32>
    %30 = vector.shape_cast %29 : vector<16x1xf32> to vector<1x16x1xf32>
    %cst_11 = arith.constant dense<0.000000e+00> : vector<1xf32>
    %31 = vector.multi_reduction <add>, %30, %cst_11 [1, 2] : vector<1x16x1xf32> to vector<1xf32>
    %32 = vector.shape_cast %31 : vector<1xf32> to vector<1x1x1xf32>
    %33 = vector.extract %32[0, 0, 0] : f32 from vector<1x1x1xf32>
    %34 = vector.broadcast %33 : f32 to vector<1x8x128xf32>
    %c0_12 = arith.constant 0 : index
    %c0_13 = arith.constant 0 : index
    %c0_14 = arith.constant 0 : index
    %35 = vector.load %arg4[%c0_12, %c0_13, %c0_14] : memref<1x8x128xf32, #tpu.memory_space<vmem>>, vector<1x8x128xf32>
    tpu.vector_store %arg4[%c0_12, %c0_13, %c0_14], %34 {strides = array<i32>} : memref<1x8x128xf32, #tpu.memory_space<vmem>>, vector<1x8x128xf32>,
    return
  }
  func.func @transform_0(%arg0: i32) -> (i32, i32) {
    %c0_i32 = arith.constant 0 : i32
    %c0_i32_0 = arith.constant 0 : i32
    return %arg0, %c0_i32 : i32, i32
  }
  func.func @transform_1(%arg0: i32) -> (i32, i32) {
    %c0_i32 = arith.constant 0 : i32
    %c0_i32_0 = arith.constant 0 : i32
    return %arg0, %c0_i32 : i32, i32
  }
  func.func @transform_2(%arg0: i32) -> (i32, i32) {
    %c0_i32 = arith.constant 0 : i32
    %c0_i32_0 = arith.constant 0 : i32
    return %arg0, %c0_i32 : i32, i32
  }
  func.func @transform_3(%arg0: i32) -> (i32, i32, i32) {
    %c0_i32 = arith.constant 0 : i32
    %c0_i32_0 = arith.constant 0 : i32
    %c0_i32_1 = arith.constant 0 : i32
    return %arg0, %c0_i32, %c0_i32_0 : i32, i32, i32
  }
}

</mosaic_0001>

<llo_original>
// kernel: triplet_loss.1
$region0: #{triplet_loss.1}
  #allocation0 [shape = 'u32[]', space=smem, size = 0x4, offset = 0x4, fixed_abs, tag = 'smem constant byte address 0x4 - core index']
  #allocation1 [shape = 'u32[144,128]{1,0:T(1,128)}', space=vmem, size = 0x12000, scoped, tag = 'internal scratch']
  %s0 = inlined_call_operand.hbm [shape: f32[40,128], index: 0, kind: input, shape index: {}]
  %s1 = inlined_call_operand.hbm [shape: f32[40,128], index: 1, kind: input, shape index: {}]
  %s2 = inlined_call_operand.hbm [shape: f32[40,128], index: 2, kind: input, shape index: {}]
  %s3 = inlined_call_operand.vmem [shape: f32[3,8,128], index: 3, kind: output, shape index: {}]
  %s4 = sld [smem:[#allocation0]]
  $region57: #{triplet_loss.1} parent=0
    _
  %s6 = ssub.s32 1, %s4
  %s7 = scalar_select 0, %s6, %s4
  $region1: #{triplet_loss.1} parent=0
    #allocation2 [shape = 'u8[16384]{0}', space=vmem, size = 0x4000, scoped, tag = 'input window, operand 0']
    #allocation3 [shape = 's32[2]{0}', space=sflag, size = 0x8, scoped, tag = 'scoped memory for triplet_loss.1']
    #allocation4 [shape = 'u8[16384]{0}', space=vmem, size = 0x4000, scoped, tag = 'input window, operand 1']
    #allocation5 [shape = 's32[2]{0}', space=sflag, size = 0x8, scoped, tag = 'scoped memory for triplet_loss.1']
    #allocation6 [shape = 'u8[16384]{0}', space=vmem, size = 0x4000, scoped, tag = 'input window, operand 2']
    %8 = vsyncpa [#allocation3], 0
    %s9 = scalar_lea.sflag [#allocation3], 1
    %10 = vsyncpa %s9, 0
    %11 = vsyncpa [#allocation5], 0
    %s12 = scalar_lea.sflag [#allocation5], 1
    %13 = vsyncpa %s12, 0
    loop: start=0, step=1, limit=5
    $region2: #{triplet_loss.1} parent=1 // loop_pre_header
      _
    $region3: #{triplet_loss.1} parent=1 // loop_header
      %s15 = sphi 0, %s19
      %p16 = scmp.ge.s32.totalorder %s15, 5
      %s25 = sphi 0, %s27
      %s28 = sphi 0, %s25
      %s29 = sphi 0, %s28
      %s45 = sphi 0, %s29
      %s51 = sphi 0, %s53
      %s54 = sphi 0, %s51
      %s55 = sphi 0, %s54
      %s71 = sphi 0, %s55
      %s77 = sphi 0, %s79
      %s80 = sphi 0, %s77
      %s81 = sphi 0, %s80
      %s97 = sphi 0, %s81
      %s103 = sphi 0, %s105
      %s106 = sphi 0, %s103
      %s107 = sphi 0, %s106
      %s123 = sphi 0, %s107
    $region4: #{triplet_loss.1} parent=1 // loop_header_branch
      %18 = sbr.rel (%p16) target = $region8
    $region5: #{triplet_loss.1} parent=1 // loop_body
      %s20 = ssub.s32 %s15, 1
      %s21 = ssub.s32 %s15, 2
      %s22 = sadd.s32 %s15, 1
      %s23 = ssub.s32 %s15, %s22
      %p24 = scmp.eq.s32.totalorder %s23, 0
      %s26 = sadd.s32 %s25, 1
      %s27 = scalar_select %p24, %s25, %s26
      %p30 = pneg %p24
      %p31 = scmp.eq.s32.totalorder %s15, 2
      %p32 = por %p30, %p31
      %p33 = scmp.ne.s32.totalorder %s25, %s28
      %p34 = scmp.eq.s32.totalorder %s15, 0
      %p35 = por %p33, %p34
      %p36 = scmp.ne.s32.totalorder %s25, %s28
      %p37 = scmp.eq.s32.totalorder %s20, 2
      %p38 = por %p36, %p37
      %p39 = scmp.ne.s32.totalorder %s28, %s29
      %p40 = scmp.eq.s32.totalorder %s20, 0
      %p41 = por %p39, %p40
      %p42 = scmp.ne.s32.totalorder %s28, %s29
      %p43 = scmp.eq.s32.totalorder %s21, 2
      %p44 = por %p42, %p43
      %p46 = scmp.ne.s32.totalorder %s29, %s45
      %p47 = scmp.eq.s32.totalorder %s21, 0
      %p48 = por %p46, %p47
      %s49 = ssub.s32 %s15, %s22
      %p50 = scmp.eq.s32.totalorder %s49, 0
      %s52 = sadd.s32 %s51, 1
      %s53 = scalar_select %p50, %s51, %s52
      %p56 = pneg %p50
      %p57 = scmp.eq.s32.totalorder %s15, 2
      %p58 = por %p56, %p57
      %p59 = scmp.ne.s32.totalorder %s51, %s54
      %p60 = scmp.eq.s32.totalorder %s15, 0
      %p61 = por %p59, %p60
      %p62 = scmp.ne.s32.totalorder %s51, %s54
      %p63 = scmp.eq.s32.totalorder %s20, 2
      %p64 = por %p62, %p63
      %p65 = scmp.ne.s32.totalorder %s54, %s55
      %p66 = scmp.eq.s32.totalorder %s20, 0
      %p67 = por %p65, %p66
      %p68 = scmp.ne.s32.totalorder %s54, %s55
      %p69 = scmp.eq.s32.totalorder %s21, 2
      %p70 = por %p68, %p69
      %p72 = scmp.ne.s32.totalorder %s55, %s71
      %p73 = scmp.eq.s32.totalorder %s21, 0
      %p74 = por %p72, %p73
      %s75 = ssub.s32 %s15, %s22
      %p76 = scmp.eq.s32.totalorder %s75, 0
      %s78 = sadd.s32 %s77, 1
      %s79 = scalar_select %p76, %s77, %s78
      %p82 = pneg %p76
      %p83 = scmp.eq.s32.totalorder %s15, 2
      %p84 = por %p82, %p83
      %p85 = scmp.ne.s32.totalorder %s77, %s80
      %p86 = scmp.eq.s32.totalorder %s15, 0
      %p87 = por %p85, %p86
      %p88 = scmp.ne.s32.totalorder %s77, %s80
      %p89 = scmp.eq.s32.totalorder %s20, 2
      %p90 = por %p88, %p89
      %p91 = scmp.ne.s32.totalorder %s80, %s81
      %p92 = scmp.eq.s32.totalorder %s20, 0
      %p93 = por %p91, %p92
      %p94 = scmp.ne.s32.totalorder %s80, %s81
      %p95 = scmp.eq.s32.totalorder %s21, 2
      %p96 = por %p94, %p95
      %p98 = scmp.ne.s32.totalorder %s81, %s97
      %p99 = scmp.eq.s32.totalorder %s21, 0
      %p100 = por %p98, %p99
      %s101 = ssub.s32 %s15, %s22
      %p102 = scmp.eq.s32.totalorder %s101, 0
      %s104 = sadd.s32 %s103, 1
      %s105 = scalar_select %p102, %s103, %s104
      %p108 = pneg %p102
      %p109 = scmp.eq.s32.totalorder %s15, 2
      %p110 = por %p108, %p109
      %p111 = scmp.ne.s32.totalorder %s103, %s106
      %p112 = scmp.eq.s32.totalorder %s15, 0
      %p113 = por %p111, %p112
      %p114 = scmp.ne.s32.totalorder %s103, %s106
      %p115 = scmp.eq.s32.totalorder %s20, 2
      %p116 = por %p114, %p115
      %p117 = scmp.ne.s32.totalorder %s106, %s107
      %p118 = scmp.eq.s32.totalorder %s20, 0
      %p119 = por %p117, %p118
      %p120 = scmp.ne.s32.totalorder %s106, %s107
      %p121 = scmp.eq.s32.totalorder %s21, 2
      %p122 = por %p120, %p121
      %p124 = scmp.ne.s32.totalorder %s107, %s123
      %p125 = scmp.eq.s32.totalorder %s21, 0
      %p126 = por %p124, %p125
      %p127 = scmp.le.s32.totalorder 1, %s15
      %p128 = scmp.lt.s32.totalorder %s15, 4
      %p129 = pnand %p127, %p128
      %p130 = pneg %p129
      // Predicated region
      $region9: #{triplet_loss.1} parent=5 // pred_check
        _
      $region10: #{triplet_loss.1} parent=5 // pred_check_branch
        %132 = sbr.rel (%p129) target = $region12
      $region11: #{triplet_loss.1} parent=5 // pred_region
        %s133 = ssub.s32 %s15, 1
      $region12: #{triplet_loss.1} parent=5 // pred_fallthru
        _
      %p134 = scmp.lt.s32.totalorder %s15, 3
      // Predicated region
      $region13: #{triplet_loss.1} parent=5 // pred_check
        %p135 = pneg %p134
      $region14: #{triplet_loss.1} parent=5 // pred_check_branch
        %137 = sbr.rel (%p135) target = $region16
      $region15: #{triplet_loss.1} parent=5 // pred_region
        // Predicated region
        $region17: #{triplet_loss.1} parent=15 // pred_check
          %p138 = pneg %p35
        $region18: #{triplet_loss.1} parent=15 // pred_check_branch
          %140 = sbr.rel (%p138) target = $region20
        $region19: #{triplet_loss.1} parent=15 // pred_region
          %s141 = sand.u32 %s25, 1
          %s142 = scalar_lea.sflag [#allocation3], %s141
          %s143 = sand.u32 %s25, 1
          %s144 = smul.addr %s143, 16
          %s145 = scalar_lea.vmem [#allocation2], %s144
          %s146 = smul.u32 2, %s15
          %s147 = ssub.s32 5, %s146
          %p148 = scmp.lt.s32.totalorder %s147, 2
          %s149 = scalar_select %p148, %s147, 2
          %s150 = smul.u32 128, %s149
          %s152 = ssub.s32 256, %s150
          %153 = vsyncadd %s142, %s152
          %p154 = scmp.ne.s32.totalorder 0, %s150
          %s155 = smul.addr %s146, 128
          %s156 = scalar_lea.hbm %s0, %s155
          %s157 = smul.u32 8, %s149
          %s158 = sshll.u32 %s145, 4
          %s159 = int_to_ptr.vmem [resolvable:$true] %s158
          %s160 = sshll.u32 %s157, 4
          %164 = dma.hbm_to_vmem [thread:$0]  (%p154), %s156, %s160, %s159, %s142, 128, 128, 8
        $region20: #{triplet_loss.1} parent=15 // pred_fallthru
          _
        // Predicated region
        $region21: #{triplet_loss.1} parent=15 // pred_check
          %p165 = pneg %p61
        $region22: #{triplet_loss.1} parent=15 // pred_check_branch
          %167 = sbr.rel (%p165) target = $region24
        $region23: #{triplet_loss.1} parent=15 // pred_region
          %s168 = sand.u32 %s15, 1
          %s169 = scalar_lea.sflag [#allocation5], %s168
          %s170 = sand.u32 %s51, 1
          %s171 = smul.addr %s170, 16
          %s172 = scalar_lea.vmem [#allocation4], %s171
          %s173 = smul.u32 2, %s15
          %s174 = ssub.s32 5, %s173
          %p175 = scmp.lt.s32.totalorder %s174, 2
          %s176 = scalar_select %p175, %s174, 2
          %s177 = smul.u32 128, %s176
          %s179 = ssub.s32 256, %s177
          %180 = vsyncadd %s169, %s179
          %p181 = scmp.ne.s32.totalorder 0, %s177
          %s182 = smul.addr %s173, 128
          %s183 = scalar_lea.hbm %s1, %s182
          %s184 = smul.u32 8, %s176
          %s185 = sshll.u32 %s172, 4
          %s186 = int_to_ptr.vmem [resolvable:$true] %s185
          %s187 = sshll.u32 %s184, 4
          %191 = dma.hbm_to_vmem [thread:$0]  (%p181), %s183, %s187, %s186, %s169, 128, 128, 8
        $region24: #{triplet_loss.1} parent=15 // pred_fallthru
          _
        // Predicated region
        $region25: #{triplet_loss.1} parent=15 // pred_check
          %p192 = pneg %p87
        $region26: #{triplet_loss.1} parent=15 // pred_check_branch
          %194 = sbr.rel (%p192) target = $region28
        $region27: #{triplet_loss.1} parent=15 // pred_region
          %s195 = sand.u32 %s15, 1
          %s196 = scalar_lea.sflag [#allocation5], %s195
          %s197 = sand.u32 %s77, 1
          %s198 = smul.addr %s197, 16
          %s199 = scalar_lea.vmem [#allocation6], %s198
          %s200 = smul.u32 2, %s15
          %s201 = ssub.s32 5, %s200
          %p202 = scmp.lt.s32.totalorder %s201, 2
          %s203 = scalar_select %p202, %s201, 2
          %s204 = smul.u32 128, %s203
          %s206 = ssub.s32 256, %s204
          %207 = vsyncadd %s196, %s206
          %p208 = scmp.ne.s32.totalorder 0, %s204
          %s209 = smul.addr %s200, 128
          %s210 = scalar_lea.hbm %s2, %s209
          %s211 = smul.u32 8, %s203
          %s212 = sshll.u32 %s199, 4
          %s213 = int_to_ptr.vmem [resolvable:$true] %s212
          %s214 = sshll.u32 %s211, 4
          %218 = dma.hbm_to_vmem [thread:$0]  (%p208), %s210, %s214, %s213, %s196, 128, 128, 8
        $region28: #{triplet_loss.1} parent=15 // pred_fallthru
          _
      $region16: #{triplet_loss.1} parent=5 // pred_fallthru
        _
      %p219 = scmp.le.s32.totalorder 1, %s15
      %p220 = scmp.lt.s32.totalorder %s15, 4
      %p221 = pnand %p219, %p220
      %p222 = pneg %p221
      // Predicated region
      $region29: #{triplet_loss.1} parent=5 // pred_check
        _
      $region30: #{triplet_loss.1} parent=5 // pred_check_branch
        %224 = sbr.rel (%p221) target = $region32
      $region31: #{triplet_loss.1} parent=5 // pred_region
        %s225 = ssub.s32 %s15, 1
        %s226 = sand.u32 %s28, 1
        %s227 = scalar_lea.sflag [#allocation3], %s226
        %s228 = sand.u32 %s28, 1
        %s229 = smul.addr %s228, 16
        %s230 = scalar_lea.vmem [#allocation2], %s229
        // Predicated region
        $region33: #{triplet_loss.1} parent=31 // pred_check
          %p231 = pneg %p41
        $region34: #{triplet_loss.1} parent=31 // pred_check_branch
          %233 = sbr.rel (%p231) target = $region36
        $region35: #{triplet_loss.1} parent=31 // pred_region
          %234 = dma.done %s227, 256
        $region36: #{triplet_loss.1} parent=31 // pred_fallthru
          _
        %s235 = sand.u32 %s20, 1
        %s236 = scalar_lea.sflag [#allocation5], %s235
        %s237 = sand.u32 %s54, 1
        %s238 = smul.addr %s237, 16
        %s239 = scalar_lea.vmem [#allocation4], %s238
        // Predicated region
        $region37: #{triplet_loss.1} parent=31 // pred_check
          %p240 = pneg %p67
        $region38: #{triplet_loss.1} parent=31 // pred_check_branch
          %242 = sbr.rel (%p240) target = $region40
        $region39: #{triplet_loss.1} parent=31 // pred_region
          %243 = dma.done %s236, 256
        $region40: #{triplet_loss.1} parent=31 // pred_fallthru
          _
        %s244 = sand.u32 %s20, 1
        %s245 = scalar_lea.sflag [#allocation5], %s244
        %s246 = sand.u32 %s80, 1
        %s247 = smul.addr %s246, 16
        %s248 = scalar_lea.vmem [#allocation6], %s247
        // Predicated region
        $region41: #{triplet_loss.1} parent=31 // pred_check
          %p249 = pneg %p93
        $region42: #{triplet_loss.1} parent=31 // pred_check_branch
          %251 = sbr.rel (%p249) target = $region44
        $region43: #{triplet_loss.1} parent=31 // pred_region
          %252 = dma.done %s245, 256
        $region44: #{triplet_loss.1} parent=31 // pred_fallthru
          _
        %s253 = sand.u32 %s28, 1
        %s254 = scalar_lea.sflag [#allocation3], %s253
        %s255 = sand.u32 %s28, 1
        %s256 = smul.addr %s255, 16
        %s257 = scalar_lea.vmem [#allocation2], %s256
        %p258 = pneg %p41
        %p259 = pneg %p38
        %s260 = sand.u32 %s20, 1
        %s261 = scalar_lea.sflag [#allocation5], %s260
        %s262 = sand.u32 %s54, 1
        %s263 = smul.addr %s262, 16
        %s264 = scalar_lea.vmem [#allocation4], %s263
        %p265 = pneg %p67
        %p266 = pneg %p64
        %s267 = sand.u32 %s20, 1
        %s268 = scalar_lea.sflag [#allocation5], %s267
        %s269 = sand.u32 %s80, 1
        %s270 = smul.addr %s269, 16
        %s271 = scalar_lea.vmem [#allocation6], %s270
        %p272 = pneg %p93
        %p273 = pneg %p90
        %p274 = pneg %p119
        %p275 = pneg %p116
        %p276 = scmp.lt.s32.totalorder %s20, 2
        %s277 = scalar_select %p276, %s20, 2
        %s278 = smul.addr %s277, 8
        %s279 = scalar_lea.vmem %s3, %s278
        %s280 = smul.u32 2, %s20
        %s281 = ssub.s32 5, %s280
        %p282 = scmp.lt.s32.totalorder %s281, 2
        %s283 = scalar_select %p282, %s281, 2
        %s284 = smul.u32 128, %s283
        %s285 = smul.u32 2, %s20
        %s286 = ssub.s32 5, %s285
        %p287 = scmp.lt.s32.totalorder %s286, 2
        %s288 = scalar_select %p287, %s286, 2
        %s289 = smul.u32 128, %s288
        %s290 = smul.u32 2, %s20
        %s291 = ssub.s32 5, %s290
        %p292 = scmp.lt.s32.totalorder %s291, 2
        %s293 = scalar_select %p292, %s291, 2
        %s294 = smul.u32 128, %s293
        %p295 = scmp.lt.s32.totalorder %s20, 2
        %s296 = scalar_select %p295, %s20, 2
        %s297 = smul.addr %s296, 8
        %s298 = scalar_lea.vmem %s3, %s297
        %v299 = vld [vmem:[%s230] sm:$0xff]
        %v300 = vld [vmem:[%s230 + $0x8] sm:$0xff]
        %v301 = vld [vmem:[%s239] sm:$0xff]
        %v302 = vld [vmem:[%s239 + $0x8] sm:$0xff]
        %v303 = vld [vmem:[%s248] sm:$0xff]
        %v304 = vld [vmem:[%s248 + $0x8] sm:$0xff]
        %v305 = vsub.f32 %v299, %v301
        %v306 = vsub.f32 %v300, %v302
        %v307 = vadd.f32 %v305, 1e-06
        %v308 = vadd.f32 %v306, 1e-06
        %v309 = vsub.f32 %v299, %v303
        %v310 = vsub.f32 %v300, %v304
        %v311 = vadd.f32 %v309, 1e-06
        %v312 = vadd.f32 %v310, 1e-06
        %v313 = vmul.f32 %v307, %v307
        %v314 = vmul.f32 %v308, %v308
        %315 = vadd.xlane.f32.xlu0 %v313
        %v316 = vpop.xlane.xlu0 %315
        %317 = vadd.xlane.f32.xlu0 %v314
        %v318 = vpop.xlane.xlu0 %317
        %v319 = vrsqrt.pop %v316
        %v320 = vmul.f32 %v316, %v319
        %vm321 = vcmp.eq.f32.partialorder %v316, inf
        %v322 = vsel %vm321, %v316, %v320
        %vm323 = vcmp.eq.f32.partialorder %v316, 0.0
        %v324 = vand.u32 %v316, 2147483648
        %v325 = vsel %vm323, %v324, %v322
        %v326 = vrsqrt.pop %v318
        %v327 = vmul.f32 %v318, %v326
        %vm328 = vcmp.eq.f32.partialorder %v318, inf
        %v329 = vsel %vm328, %v318, %v327
        %vm330 = vcmp.eq.f32.partialorder %v318, 0.0
        %v331 = vand.u32 %v318, 2147483648
        %v332 = vsel %vm330, %v331, %v329
        %v333 = vmul.f32 %v311, %v311
        %v334 = vmul.f32 %v312, %v312
        %335 = vadd.xlane.f32.xlu0 %v333
        %v336 = vpop.xlane.xlu0 %335
        %337 = vadd.xlane.f32.xlu0 %v334
        %v338 = vpop.xlane.xlu0 %337
        %v339 = vrsqrt.pop %v336
        %v340 = vmul.f32 %v336, %v339
        %vm341 = vcmp.eq.f32.partialorder %v336, inf
        %v342 = vsel %vm341, %v336, %v340
        %vm343 = vcmp.eq.f32.partialorder %v336, 0.0
        %v344 = vand.u32 %v336, 2147483648
        %v345 = vsel %vm343, %v344, %v342
        %v346 = vrsqrt.pop %v338
        %v347 = vmul.f32 %v338, %v346
        %vm348 = vcmp.eq.f32.partialorder %v338, inf
        %v349 = vsel %vm348, %v338, %v347
        %vm350 = vcmp.eq.f32.partialorder %v338, 0.0
        %v351 = vand.u32 %v338, 2147483648
        %v352 = vsel %vm350, %v351, %v349
        %v353 = vsub.f32 %v325, %v345
        %v354 = vsub.f32 %v332, %v352
        %v355 = vadd.f32 %v353, 0.2
        %v356 = vadd.f32 %v354, 0.2
        %v357 = vmax.f32 %v355, 0.0
        %v358 = vmax.f32 %v356, 0.0
        %s359 = smul.u32 %s20, 16
        %v360 = vlaneseq
        %v361 = vshrl.u32 %v360, 7
        %v362 = vadd.s32 %v361, 8
        %v363 = vstv %s359
        %v364 = vadd.s32 %v363, %v361
        %v365 = vadd.s32 %v363, %v362
        %vm366 = vcmp.lt.s32.totalorder %v364, 40
        %vm367 = vcmp.lt.s32.totalorder %v365, 40
        %v368 = vsel %vm366, %v357, 0.0
        %v369 = vsel %vm367, %v358, 0.0
        %vm370 = vcmask 7168
        %v371 = vsel %vm370, %v368, 0.0
        %v372 = vsel %vm370, %v369, 0.0
        %v373 = vadd.f32 %v371, %v372
        %374 = vadd.xlane.f32.xlu0 %v373
        %v375 = vpop.xlane.xlu0 %374
        %v376 = vrot.slane %v375, 4
        %v377 = vadd.f32 %v375, %v376
        %v378 = vrot.slane %v377, 2
        %v379 = vadd.f32 %v377, %v378
        %v380 = vrot.slane %v379, 1
        %v381 = vadd.f32 %v379, %v380
        %s382 = vtos %v381
        %v383 = vstv %s382
        %384 = vst [vmem:[%s298] sm:$0xff] %v383
        %p385 = scmp.lt.s32.totalorder %s20, 2
        %s386 = scalar_select %p385, %s20, 2
        %s387 = smul.addr %s386, 8
        %s388 = scalar_lea.vmem %s3, %s387
        // Predicated region
        $region45: #{triplet_loss.1} parent=31 // pred_check
          %p389 = pneg %p116
        $region46: #{triplet_loss.1} parent=31 // pred_check_branch
          %391 = sbr.rel (%p389) target = $region48
        $region47: #{triplet_loss.1} parent=31 // pred_region
          _
        $region48: #{triplet_loss.1} parent=31 // pred_fallthru
          _
      $region32: #{triplet_loss.1} parent=5 // pred_fallthru
        _
      %p392 = scmp.le.s32.totalorder 2, %s15
      // Predicated region
      $region49: #{triplet_loss.1} parent=5 // pred_check
        %p393 = pneg %p392
      $region50: #{triplet_loss.1} parent=5 // pred_check_branch
        %395 = sbr.rel (%p393) target = $region52
      $region51: #{triplet_loss.1} parent=5 // pred_region
        %s396 = ssub.s32 %s15, 2
        // Predicated region
        $region53: #{triplet_loss.1} parent=51 // pred_check
          %p397 = pneg %p122
        $region54: #{triplet_loss.1} parent=51 // pred_check_branch
          %399 = sbr.rel (%p397) target = $region56
        $region55: #{triplet_loss.1} parent=51 // pred_region
          %p400 = scmp.lt.s32.totalorder %s21, 2
          %s401 = scalar_select %p400, %s21, 2
          %s402 = smul.addr %s401, 8
          %s403 = scalar_lea.vmem %s3, %s402
        $region56: #{triplet_loss.1} parent=51 // pred_fallthru
          _
      $region52: #{triplet_loss.1} parent=5 // pred_fallthru
        _
    $region6: #{triplet_loss.1} parent=1 // loop_footer
      %s19 = sadd.s32 1, %s15
    $region7: #{triplet_loss.1} parent=1 // loop_footer_branch
      %14 = sbr.rel target = $region3
    $region8: #{triplet_loss.1} parent=1 // loop_exit
      _
    %404 = vsyncpa [#allocation3], 1
    %s405 = scalar_lea.sflag [#allocation3], 1
    %406 = vsyncpa %s405, 1
    %407 = vsyncpa [#allocation5], 1
    %s408 = scalar_lea.sflag [#allocation5], 1
    %409 = vsyncpa %s408, 1

</llo_original>
